<compile_context>
chip_gen: v7x
topology: tpu7x:2x2x1
jax: 0.10.0
libtpu: 0.0.40
codegen_flags: <defaults>
</compile_context>

<pallas_src>
import jax
import jax.numpy as jnp
from jax.experimental import pallas as pl
from jax.experimental.pallas import tpu as pltpu

LANE = 128


def _round_up(x, m):
    return (x + m - 1) // m * m


def _mlp_kernel(x_ref, w1_ref, b1_ref, w2_ref, b2_ref, w3_ref, b3_ref, o_ref):
    # One (TILE_B, in_dim) obs tile -> one (TILE_B, out_dim) output tile.
    # All three matmuls + ReLUs fused; intermediates never leave VMEM/vregs.
    # Matmul operands in bf16 (MXU-native), accumulation/bias/ReLU in f32.
    x = x_ref[...].astype(jnp.bfloat16)

    h1 = jnp.dot(x, w1_ref[...], preferred_element_type=jnp.float32) + b1_ref[...]
    h1 = jnp.maximum(h1, 0.0)

    h2 = jnp.dot(h1.astype(jnp.bfloat16), w2_ref[...],
                 preferred_element_type=jnp.float32) + b2_ref[...]
    h2 = jnp.maximum(h2, 0.0)

    out = jnp.dot(h2.astype(jnp.bfloat16), w3_ref[...],
                  preferred_element_type=jnp.float32) + b3_ref[...]

    # Only the real output channels reach HBM (not the 128-lane matmul pad).
    o_ref[...] = out[:, : o_ref.shape[-1]].astype(o_ref.dtype)


def prepare_params(params):
    """One-time parameter prep (hoisted out of the per-call hot path).

    Transposes torch-layout weights to (in, out), casts them to bf16,
    zero-pads hidden/output feature dims to multiples of 128 lanes, and lifts
    biases (kept f32) to (1, padded_out).
    """
    w1, b1 = params["w1"], params["b1"]   # (hid, in),  (hid,)
    w2, b2 = params["w2"], params["b2"]   # (hid, hid), (hid,)
    w3, b3 = params["w3"], params["b3"]   # (out, hid), (out,)

    in_dim = w1.shape[1]
    hid = w1.shape[0]
    out_dim = w3.shape[0]
    hid_p = _round_up(hid, LANE)
    out_p = _round_up(out_dim, LANE)

    def pad_to(a, shape):
        return jnp.pad(a, [(0, s - d) for d, s in zip(a.shape, shape)])

    return {
        "w1t": pad_to(w1.T.astype(jnp.bfloat16), (in_dim, hid_p)),
        "b1": pad_to(b1.astype(jnp.float32)[None, :], (1, hid_p)),
        "w2t": pad_to(w2.T.astype(jnp.bfloat16), (hid_p, hid_p)),
        "b2": pad_to(b2.astype(jnp.float32)[None, :], (1, hid_p)),
        "w3t": pad_to(w3.T.astype(jnp.bfloat16), (hid_p, out_p)),
        "b3": pad_to(b3.astype(jnp.float32)[None, :], (1, out_p)),
        "in_dim": in_dim,
        "out_dim": out_dim,
        "hid_p": hid_p,
        "out_p": out_p,
    }


def _choose_tile_b(batch, tile_b):
    """Batch tile: small batches get one tile; otherwise keep >= 2 grid steps
    (so v7x's two TensorCores both work) with 256-row granularity (full MXU
    row-groups on v6e/v7x; also a multiple of 128 for v5e)."""
    rb = _round_up(batch, 8)
    if rb <= 256:
        return rb
    half = _round_up((rb + 1) // 2, 256)     # >= 2 steps even at medium batch
    tb = max(8, min(tile_b, half))
    gran = 256 if tb >= 256 else (128 if tb >= 128 else 8)
    return _round_up(tb, gran)


def feedforward_nn(obs, prepared, *, tile_b=1024, out_dtype=jnp.float32):
    """Forward pass of FeedForwardNN via a single batch-gridded Pallas kernel.

    obs:      (batch, in_dim) float32
    prepared: output of prepare_params(params)
    """
    batch, in_dim = obs.shape
    assert in_dim == prepared["in_dim"], "obs feature dim mismatch"
    hid_p, out_p, out_dim = prepared["hid_p"], prepared["out_p"], prepared["out_dim"]

    obs = obs.astype(jnp.float32)
    tb = _choose_tile_b(batch, tile_b)
    grid = (pl.cdiv(batch, tb),)   # boundary block: Pallas masks its stores

    const = lambda i: (0, 0)       # weights/biases: same block every step -> VMEM-resident

    out = pl.pallas_call(
        _mlp_kernel,
        out_shape=jax.ShapeDtypeStruct((batch, out_dim), out_dtype),
        grid=grid,
        in_specs=[
            pl.BlockSpec((tb, in_dim), lambda i: (i, 0)),   # obs streams over batch
            pl.BlockSpec((in_dim, hid_p), const),
            pl.BlockSpec((1, hid_p), const),
            pl.BlockSpec((hid_p, hid_p), const),
            pl.BlockSpec((1, hid_p), const),
            pl.BlockSpec((hid_p, out_p), const),
            pl.BlockSpec((1, out_p), const),
        ],
        out_specs=pl.BlockSpec((tb, out_dim), lambda i: (i, 0)),  # true-width stores
        compiler_params=pltpu.CompilerParams(
            dimension_semantics=("parallel",),  # v7x: shard batch across both TCs
        ),
    )(obs, prepared["w1t"], prepared["b1"], prepared["w2t"], prepared["b2"],
      prepared["w3t"], prepared["b3"])

    return out


def init_params(key, in_dim, out_dim, hidden=64):
    """Deterministic synthetic parameters matching nn.Linear shapes."""
    ks = jax.random.split(key, 6)

    def lin(kw, kb, fan_in, fan_out):
        bound = 1.0 / jnp.sqrt(fan_in)
        w = jax.random.uniform(kw, (fan_out, fan_in), jnp.float32, -bound, bound)
        b = jax.random.uniform(kb, (fan_out,), jnp.float32, -bound, bound)
        return w, b

    w1, b1 = lin(ks[0], ks[1], in_dim, hidden)
    w2, b2 = lin(ks[2], ks[3], hidden, hidden)
    w3, b3 = lin(ks[4], ks[5], hidden, out_dim)
    return {"w1": w1, "b1": b1, "w2": w2, "b2": b2, "w3": w3, "b3": b3}


def _reference(obs, params):
    h1 = jnp.maximum(obs @ params["w1"].T + params["b1"], 0.0)
    h2 = jnp.maximum(h1 @ params["w2"].T + params["b2"], 0.0)
    return h2 @ params["w3"].T + params["b3"]


if __name__ == "__main__":
    key = jax.random.PRNGKey(0)
    k_obs, k_obs2, k_param = jax.random.split(key, 3)

    in_dim, out_dim = 8, 4
    params = init_params(k_param, in_dim, out_dim)
    prepared = prepare_params(params)   # one-time prep, outside the hot path

    # Small-batch check (single grid step, partial boundary tile masking).
    batch = 2
    obs = jax.random.normal(k_obs, (batch, in_dim), dtype=jnp.float32)
    out = jax.block_until_ready(feedforward_nn(obs, prepared))
    ref = _reference(obs, params)
    assert out.shape == (batch, out_dim)
    # bf16 matmul operands with f32 accumulation -> loosened tolerance.
    assert jnp.allclose(out, ref, atol=5e-2, rtol=5e-2)

    # Multi-tile check: non-divisible batch exercises grid > 1 + boundary block.
    batch2 = 300
    obs2 = jax.random.normal(k_obs2, (batch2, in_dim), dtype=jnp.float32)
    out2 = jax.block_until_ready(feedforward_nn(obs2, prepared, tile_b=128))
    ref2 = _reference(obs2, params)
    assert out2.shape == (batch2, out_dim)
    assert jnp.allclose(out2, ref2, atol=5e-2, rtol=5e-2)
    assert jnp.all(jnp.isfinite(out2))

    print("KERNEL_OK")
</pallas_src>

<mosaic_0001>
module attributes {stable_mosaic.version = 11 : i64} {
  func.func @_mlp_kernel(%arg0: i32, %arg1: memref<8x8xf32, #tpu.memory_space<vmem>>, %arg2: memref<8x128xbf16, #tpu.memory_space<vmem>>, %arg3: memref<1x128xf32, #tpu.memory_space<vmem>>, %arg4: memref<128x128xbf16, #tpu.memory_space<vmem>>, %arg5: memref<1x128xf32, #tpu.memory_space<vmem>>, %arg6: memref<128x128xbf16, #tpu.memory_space<vmem>>, %arg7: memref<1x128xf32, #tpu.memory_space<vmem>>, %arg8: memref<8x4xf32, #tpu.memory_space<vmem>>) attributes {dimension_semantics = [#tpu.dimension_semantics<parallel>], iteration_bounds = array<i64: 1>, scalar_prefetch = 0 : i64, scratch_operands = 0 : i64, tpu.core_type = #tpu.core_type<tc>, window_params = [{transform_indices = @transform_0, window_bounds = array<i64: 8, 8>}, {pipeline_mode = #tpu.pipeline_mode<synchronous>, transform_indices = @transform_1, window_bounds = array<i64: 8, 128>}, {pipeline_mode = #tpu.pipeline_mode<synchronous>, transform_indices = @transform_2, window_bounds = array<i64: 1, 128>}, {pipeline_mode = #tpu.pipeline_mode<synchronous>, transform_indices = @transform_3, window_bounds = array<i64: 128, 128>}, {pipeline_mode = #tpu.pipeline_mode<synchronous>, transform_indices = @transform_4, window_bounds = array<i64: 1, 128>}, {pipeline_mode = #tpu.pipeline_mode<synchronous>, transform_indices = @transform_5, window_bounds = array<i64: 128, 128>}, {pipeline_mode = #tpu.pipeline_mode<synchronous>, transform_indices = @transform_6, window_bounds = array<i64: 1, 128>}, {transform_indices = @transform_7, window_bounds = array<i64: 8, 4>}]} {
    %c0 = arith.constant 0 : index
    %c0_0 = arith.constant 0 : index
    %0 = vector.load %arg1[%c0, %c0_0] : memref<8x8xf32, #tpu.memory_space<vmem>>, vector<8x8xf32>
    %1 = arith.truncf %0 : vector<8x8xf32> to vector<8x8xbf16>
    %c0_1 = arith.constant 0 : index
    %c0_2 = arith.constant 0 : index
    %2 = vector.load %arg2[%c0_1, %c0_2] : memref<8x128xbf16, #tpu.memory_space<vmem>>, vector<8x128xbf16>
    %cst = arith.constant dense<0.000000e+00> : vector<8x128xf32>
    %3 = tpu.matmul %1, %2, %cst {dimension_numbers = #tpu.dot_dimension_numbers<[1], [0], [0], [1], [0, 0, 1, 1], [], []>} : vector<8x8xbf16>, vector<8x128xbf16>, vector<8x128xf32> -> vector<8x128xf32>
    %c0_3 = arith.constant 0 : index
    %c0_4 = arith.constant 0 : index
    %4 = vector.load %arg3[%c0_3, %c0_4] : memref<1x128xf32, #tpu.memory_space<vmem>>, vector<1x128xf32>
    %5 = vector.broadcast %4 : vector<1x128xf32> to vector<8x128xf32>
    %6 = arith.addf %3, %5 : vector<8x128xf32>
    %cst_5 = arith.constant 0.000000e+00 : f32
    %7 = vector.broadcast %cst_5 : f32 to vector<8x128xf32>
    %8 = arith.maximumf %6, %7 : vector<8x128xf32>
    %9 = arith.truncf %8 : vector<8x128xf32> to vector<8x128xbf16>
    %c0_6 = arith.constant 0 : index
    %c0_7 = arith.constant 0 : index
    %10 = vector.load %arg4[%c0_6, %c0_7] : memref<128x128xbf16, #tpu.memory_space<vmem>>, vector<128x128xbf16>
    %cst_8 = arith.constant dense<0.000000e+00> : vector<8x128xf32>
    %11 = tpu.matmul %9, %10, %cst_8 {dimension_numbers = #tpu.dot_dimension_numbers<[1], [0], [0], [1], [0, 0, 1, 1], [], []>} : vector<8x128xbf16>, vector<128x128xbf16>, vector<8x128xf32> -> vector<8x128xf32>
    %c0_9 = arith.constant 0 : index
    %c0_10 = arith.constant 0 : index
    %12 = vector.load %arg5[%c0_9, %c0_10] : memref<1x128xf32, #tpu.memory_space<vmem>>, vector<1x128xf32>
    %13 = vector.broadcast %12 : vector<1x128xf32> to vector<8x128xf32>
    %14 = arith.addf %11, %13 : vector<8x128xf32>
    %cst_11 = arith.constant 0.000000e+00 : f32
    %15 = vector.broadcast %cst_11 : f32 to vector<8x128xf32>
    %16 = arith.maximumf %14, %15 : vector<8x128xf32>
    %17 = arith.truncf %16 : vector<8x128xf32> to vector<8x128xbf16>
    %c0_12 = arith.constant 0 : index
    %c0_13 = arith.constant 0 : index
    %18 = vector.load %arg6[%c0_12, %c0_13] : memref<128x128xbf16, #tpu.memory_space<vmem>>, vector<128x128xbf16>
    %cst_14 = arith.constant dense<0.000000e+00> : vector<8x128xf32>
    %19 = tpu.matmul %17, %18, %cst_14 {dimension_numbers = #tpu.dot_dimension_numbers<[1], [0], [0], [1], [0, 0, 1, 1], [], []>} : vector<8x128xbf16>, vector<128x128xbf16>, vector<8x128xf32> -> vector<8x128xf32>
    %c0_15 = arith.constant 0 : index
    %c0_16 = arith.constant 0 : index
    %20 = vector.load %arg7[%c0_15, %c0_16] : memref<1x128xf32, #tpu.memory_space<vmem>>, vector<1x128xf32>
    %21 = vector.broadcast %20 : vector<1x128xf32> to vector<8x128xf32>
    %22 = arith.addf %19, %21 : vector<8x128xf32>
    %23 = vector.extract_strided_slice %22 {offsets = [0, 0], sizes = [8, 4], strides = [1, 1]} : vector<8x128xf32> to vector<8x4xf32>
    %c0_17 = arith.constant 0 : index
    %c0_18 = arith.constant 0 : index
    %24 = vector.load %arg8[%c0_17, %c0_18] : memref<8x4xf32, #tpu.memory_space<vmem>>, vector<8x4xf32>
    tpu.vector_store %arg8[%c0_17, %c0_18], %23 {strides = array<i32>} : memref<8x4xf32, #tpu.memory_space<vmem>>, vector<8x4xf32>,
    return
  }
  func.func @transform_0(%arg0: i32) -> (i32, i32) {
    %c0_i32 = arith.constant 0 : i32
    %c0_i32_0 = arith.constant 0 : i32
    return %arg0, %c0_i32 : i32, i32
  }
  func.func @transform_1(%arg0: i32) -> (i32, i32) {
    %c0_i32 = arith.constant 0 : i32
    %c0_i32_0 = arith.constant 0 : i32
    %c0_i32_1 = arith.constant 0 : i32
    return %c0_i32, %c0_i32_0 : i32, i32
  }
  func.func @transform_2(%arg0: i32) -> (i32, i32) {
    %c0_i32 = arith.constant 0 : i32
    %c0_i32_0 = arith.constant 0 : i32
    %c0_i32_1 = arith.constant 0 : i32
    return %c0_i32, %c0_i32_0 : i32, i32
  }
  func.func @transform_3(%arg0: i32) -> (i32, i32) {
    %c0_i32 = arith.constant 0 : i32
    %c0_i32_0 = arith.constant 0 : i32
    %c0_i32_1 = arith.constant 0 : i32
    return %c0_i32, %c0_i32_0 : i32, i32
  }
  func.func @transform_4(%arg0: i32) -> (i32, i32) {
    %c0_i32 = arith.constant 0 : i32
    %c0_i32_0 = arith.constant 0 : i32
    %c0_i32_1 = arith.constant 0 : i32
    return %c0_i32, %c0_i32_0 : i32, i32
  }
  func.func @transform_5(%arg0: i32) -> (i32, i32) {
    %c0_i32 = arith.constant 0 : i32
    %c0_i32_0 = arith.constant 0 : i32
    %c0_i32_1 = arith.constant 0 : i32
    return %c0_i32, %c0_i32_0 : i32, i32
  }
  func.func @transform_6(%arg0: i32) -> (i32, i32) {
    %c0_i32 = arith.constant 0 : i32
    %c0_i32_0 = arith.constant 0 : i32
    %c0_i32_1 = arith.constant 0 : i32
    return %c0_i32, %c0_i32_0 : i32, i32
  }
  func.func @transform_7(%arg0: i32) -> (i32, i32) {
    %c0_i32 = arith.constant 0 : i32
    %c0_i32_0 = arith.constant 0 : i32
    return %arg0, %c0_i32 : i32, i32
  }
}

</mosaic_0001>

<llo_original>
// kernel: tpu_custom_call.1
$region0: #{tpu_custom_call.1}
  #allocation0 [shape = 'u32[]', space=smem, size = 0x4, offset = 0x4, fixed_abs, tag = 'smem constant byte address 0x4 - core index']
  #allocation1 [shape = 'u32[144,128]{1,0:T(1,128)}', space=vmem, size = 0x12000, scoped, tag = 'internal scratch']
  %s0 = inlined_call_operand.hbm [shape: f32[2,8], index: 0, kind: input, shape index: {}]
  %s1 = inlined_call_operand.hbm [shape: bf16[8,128], index: 1, kind: input, shape index: {}]
  %s2 = inlined_call_operand.vmem [shape: f32[1,128], index: 2, kind: input, shape index: {}]
  %s3 = inlined_call_operand.hbm [shape: bf16[128,128], index: 3, kind: input, shape index: {}]
  %s4 = inlined_call_operand.vmem [shape: f32[1,128], index: 4, kind: input, shape index: {}]
  %s5 = inlined_call_operand.hbm [shape: bf16[128,128], index: 5, kind: input, shape index: {}]
  %s6 = inlined_call_operand.vmem [shape: f32[1,128], index: 6, kind: input, shape index: {}]
  %s7 = inlined_call_operand.hbm [shape: f32[2,4], index: 7, kind: output, shape index: {}]
  %s8 = sld [smem:[#allocation0]]
  $region54: #{tpu_custom_call.1} parent=0
    _
  %s10 = ssub.s32 1, %s8
  %s11 = scalar_select 0, %s10, %s8
  $region1: #{tpu_custom_call.1} parent=0
    #allocation2 [shape = 'u8[4096]{0}', space=vmem, size = 0x1000, scoped, tag = 'input window, operand 0, single buffered']
    #allocation3 [shape = 's32[1]{0}', space=sflag, size = 0x4, scoped, tag = 'scoped memory for tpu_custom_call.1']
    #allocation4 [shape = 's32[1]{0}', space=sflag, size = 0x4, scoped, tag = 'scoped memory for tpu_custom_call.1']
    #allocation5 [shape = 'u8[2048]{0}', space=vmem, size = 0x800, scoped, tag = 'input window, operand 1, single buffered']
    #allocation6 [shape = 's32[1]{0}', space=sflag, size = 0x4, scoped, tag = 'scoped memory for tpu_custom_call.1']
    #allocation7 [shape = 'u8[32768]{0}', space=vmem, size = 0x8000, scoped, tag = 'input window, operand 3, single buffered']
    #allocation8 [shape = 'u8[32768]{0}', space=vmem, size = 0x8000, scoped, tag = 'input window, operand 5, single buffered']
    #allocation9 [shape = 's32[1]{0}', space=sflag, size = 0x4, scoped, tag = 'scoped memory for tpu_custom_call.1']
    #allocation10 [shape = 'u8[4096]{0}', space=vmem, size = 0x1000, scoped, tag = 'output window, operand 0, single buffered']
    %12 = vsyncpa [#allocation3], 0
    %13 = vsyncpa [#allocation6], 0
    %14 = vsyncpa [#allocation9], 0
    %15 = vsyncpa [#allocation4], 0
    // Predicated region
    $region2: #{tpu_custom_call.1} parent=1 // pred_check
      _
    $region3: #{tpu_custom_call.1} parent=1 // pred_check_branch
      %17 = sbr.rel (0) target = $region5
    $region4: #{tpu_custom_call.1} parent=1 // pred_region
      %s19 = ssub.s32 128, 32
      %20 = vsyncadd [#allocation3], %s19
      %s21 = sshll.u32 [#allocation2], 4
      %s22 = int_to_ptr.vmem [resolvable:$true] %s21
      %27 = dma.hbm_to_vmem [thread:$0]  %s0, 32, %s22, [#allocation3], 32, 32, 2
    $region5: #{tpu_custom_call.1} parent=1 // pred_fallthru
      _
    // Predicated region
    $region6: #{tpu_custom_call.1} parent=1 // pred_check
      _
    $region7: #{tpu_custom_call.1} parent=1 // pred_check_branch
      %29 = sbr.rel (0) target = $region9
    $region8: #{tpu_custom_call.1} parent=1 // pred_region
      %s31 = ssub.s32 64, 64
      %32 = vsyncadd [#allocation6], %s31
      %s34 = sshll.u32 [#allocation5], 4
      %s35 = int_to_ptr.vmem [resolvable:$true] %s34
      %37 = dma.hbm_to_vmem [thread:$0]  %s1, 64, %s35, [#allocation6]
    $region9: #{tpu_custom_call.1} parent=1 // pred_fallthru
      _
    // Predicated region
    $region10: #{tpu_custom_call.1} parent=1 // pred_check
      _
    $region11: #{tpu_custom_call.1} parent=1 // pred_check_branch
      %39 = sbr.rel (0) target = $region13
    $region12: #{tpu_custom_call.1} parent=1 // pred_region
      _
    $region13: #{tpu_custom_call.1} parent=1 // pred_fallthru
      _
    // Predicated region
    $region14: #{tpu_custom_call.1} parent=1 // pred_check
      _
    $region15: #{tpu_custom_call.1} parent=1 // pred_check_branch
      %41 = sbr.rel (0) target = $region17
    $region16: #{tpu_custom_call.1} parent=1 // pred_region
      %s43 = ssub.s32 1024, 1024
      %44 = vsyncadd [#allocation6], %s43
      %s45 = sshll.u32 [#allocation7], 4
      %s46 = int_to_ptr.vmem [resolvable:$true] %s45
      %51 = dma.hbm_to_vmem [thread:$0]  %s3, 1024, %s46, [#allocation6], 64, 64, 4
    $region17: #{tpu_custom_call.1} parent=1 // pred_fallthru
      _
    // Predicated region
    $region18: #{tpu_custom_call.1} parent=1 // pred_check
      _
    $region19: #{tpu_custom_call.1} parent=1 // pred_check_branch
      %53 = sbr.rel (0) target = $region21
    $region20: #{tpu_custom_call.1} parent=1 // pred_region
      _
    $region21: #{tpu_custom_call.1} parent=1 // pred_fallthru
      _
    // Predicated region
    $region22: #{tpu_custom_call.1} parent=1 // pred_check
      _
    $region23: #{tpu_custom_call.1} parent=1 // pred_check_branch
      %55 = sbr.rel (0) target = $region25
    $region24: #{tpu_custom_call.1} parent=1 // pred_region
      %s57 = ssub.s32 1024, 1024
      %58 = vsyncadd [#allocation9], %s57
      %s59 = sshll.u32 [#allocation8], 4
      %s60 = int_to_ptr.vmem [resolvable:$true] %s59
      %65 = dma.hbm_to_vmem [thread:$0]  %s5, 1024, %s60, [#allocation9], 64, 64, 4
    $region25: #{tpu_custom_call.1} parent=1 // pred_fallthru
      _
    // Predicated region
    $region26: #{tpu_custom_call.1} parent=1 // pred_check
      _
    $region27: #{tpu_custom_call.1} parent=1 // pred_check_branch
      %67 = sbr.rel (0) target = $region29
    $region28: #{tpu_custom_call.1} parent=1 // pred_region
      _
    $region29: #{tpu_custom_call.1} parent=1 // pred_fallthru
      _
    // Predicated region
    $region30: #{tpu_custom_call.1} parent=1 // pred_check
      _
    $region31: #{tpu_custom_call.1} parent=1 // pred_check_branch
      %69 = sbr.rel (0) target = $region33
    $region32: #{tpu_custom_call.1} parent=1 // pred_region
      %70 = dma.done [#allocation3], 128
    $region33: #{tpu_custom_call.1} parent=1 // pred_fallthru
      _
    // Predicated region
    $region34: #{tpu_custom_call.1} parent=1 // pred_check
      _
    $region35: #{tpu_custom_call.1} parent=1 // pred_check_branch
      %72 = sbr.rel (0) target = $region37
    $region36: #{tpu_custom_call.1} parent=1 // pred_region
      %73 = dma.done [#allocation6], 64
    $region37: #{tpu_custom_call.1} parent=1 // pred_fallthru
      _
    // Predicated region
    $region38: #{tpu_custom_call.1} parent=1 // pred_check
      _
    $region39: #{tpu_custom_call.1} parent=1 // pred_check_branch
      %75 = sbr.rel (0) target = $region41
    $region40: #{tpu_custom_call.1} parent=1 // pred_region
      %76 = dma.done [#allocation6], 1024
    $region41: #{tpu_custom_call.1} parent=1 // pred_fallthru
      _
    // Predicated region
    $region42: #{tpu_custom_call.1} parent=1 // pred_check
      _
    $region43: #{tpu_custom_call.1} parent=1 // pred_check_branch
      %78 = sbr.rel (0) target = $region45
    $region44: #{tpu_custom_call.1} parent=1 // pred_region
      %79 = dma.done [#allocation9], 1024
    $region45: #{tpu_custom_call.1} parent=1 // pred_fallthru
      _
    %v81 = vld [vmem:[#allocation2] sm:$0xff]
    %v82 = vpack.c.bf16 %v81, %v81
    %v83 = vld [vmem:[#allocation5] sm:$0xf]
    %v84 = vld [vmem:[%s2] sm:$0x1]
    %v86 = vlaneseq
    %v87 = vshrl.u32 %v86, 7
    %v88 = vsub.s32 0, %v87
    %v89 = vrot.slane %v84, %v88
    %vm91 = vcmask 64512
    %v93 = vsel %vm91, %v82, 0
    %vm95 = vcmask 1043456
    %v97 = vsel %vm95, %v83, 0
    %99 = vmatprep.subr.bf16.mxu0 0
    %100 = vmatpush1.bf16.msra.mxu0 %v97
    %101 = vmatprep.subr.bf16.mxu0 0
    %102 = vmatpush1.bf16.msra.mxu0 0
    %103 = vmatprep.subr.bf16.mxu0 0
    %104 = vmatpush1.bf16.msra.mxu0 0
    %105 = vmatprep.subr.bf16.mxu0 0
    %106 = vmatpush1.bf16.msra.mxu0 0
    %107 = vmatprep.subr.bf16.mxu0 0
    %108 = vmatpush1.bf16.msra.mxu0 0
    %109 = vmatprep.subr.bf16.mxu0 0
    %110 = vmatpush1.bf16.msra.mxu0 0
    %111 = vmatprep.subr.bf16.mxu0 0
    %112 = vmatpush1.bf16.msra.mxu0 0
    %113 = vmatprep.subr.bf16.mxu0 0
    %114 = vmatpush1.bf16.msra.mxu0 0
    %115 = vmatprep.subr.bf16.mxu0 0
    %116 = vmatpush1.bf16.msra.mxu0 0
    %117 = vmatprep.subr.bf16.mxu0 0
    %118 = vmatpush1.bf16.msra.mxu0 0
    %119 = vmatprep.subr.bf16.mxu0 0
    %120 = vmatpush1.bf16.msra.mxu0 0
    %121 = vmatprep.subr.bf16.mxu0 0
    %122 = vmatpush1.bf16.msra.mxu0 0
    %123 = vmatprep.subr.bf16.mxu0 0
    %124 = vmatpush1.bf16.msra.mxu0 0
    %125 = vmatprep.subr.bf16.mxu0 0
    %126 = vmatpush1.bf16.msra.mxu0 0
    %127 = vmatprep.subr.bf16.mxu0 0
    %128 = vmatpush1.bf16.msra.mxu0 0
    %129 = vmatprep.subr.bf16.mxu0 0
    %130 = vmatpush1.bf16.msra.mxu0 0
    %131 = vmatprep.mubr.bf16.mxu0 0
    %132 = vmatmul.mubr.bf16.gmra.mrb[0].mxu0 %v93
    %v133 = vpop.f32.mrb[0].mxu0
    %v134 = vadd.f32 %v89, %v133
    %v135 = vpop.f32.mrb[0].mxu0
    %v136 = vpop.f32.mrb[0].mxu0
    %v137 = vpop.f32.mrb[0].mxu0
    %138 = vdwg.mxu0
    %v139 = vmax.f32 %v134, 0.0
    %v140 = vpack.c.bf16 %v139, %v139
    %v141 = vld [vmem:[#allocation7] sm:$0xf]
    %v142 = vld [vmem:[#allocation7 + $0x4] sm:$0xf]
    %v143 = vld [vmem:[#allocation7 + $0x8] sm:$0xf]
    %v144 = vld [vmem:[#allocation7 + $0xc] sm:$0xf]
    %v145 = vld [vmem:[#allocation7 + $0x10] sm:$0xf]
    %v146 = vld [vmem:[#allocation7 + $0x14] sm:$0xf]
    %v147 = vld [vmem:[#allocation7 + $0x18] sm:$0xf]
    %v148 = vld [vmem:[#allocation7 + $0x1c] sm:$0xf]
    %v149 = vld [vmem:[#allocation7 + $0x20] sm:$0xf]
    %v150 = vld [vmem:[#allocation7 + $0x24] sm:$0xf]
    %v151 = vld [vmem:[#allocation7 + $0x28] sm:$0xf]
    %v152 = vld [vmem:[#allocation7 + $0x2c] sm:$0xf]
    %v153 = vld [vmem:[#allocation7 + $0x30] sm:$0xf]
    %v154 = vld [vmem:[#allocation7 + $0x34] sm:$0xf]
    %v155 = vld [vmem:[#allocation7 + $0x38] sm:$0xf]
    %v156 = vld [vmem:[#allocation7 + $0x3c] sm:$0xf]
    %v157 = vld [vmem:[%s4] sm:$0x1]
    %v159 = vlaneseq
    %v160 = vshrl.u32 %v159, 7
    %v161 = vsub.s32 0, %v160
    %v162 = vrot.slane %v157, %v161
    %v180 = vunpack.c.l.b16 %v141
    %v181 = vunpack.c.l.b16 %v142
    %v182 = vunpack.c.l.b16 %v143
    %v183 = vunpack.c.l.b16 %v144
    %v184 = vunpack.c.l.b16 %v145
    %v185 = vunpack.c.l.b16 %v146
    %v186 = vunpack.c.l.b16 %v147
    %v187 = vunpack.c.l.b16 %v148
    %v188 = vunpack.c.l.b16 %v149
    %v189 = vunpack.c.l.b16 %v150
    %v190 = vunpack.c.l.b16 %v151
    %v191 = vunpack.c.l.b16 %v152
    %v192 = vunpack.c.l.b16 %v153
    %v193 = vunpack.c.l.b16 %v154
    %v194 = vunpack.c.l.b16 %v155
    %v195 = vunpack.c.l.b16 %v156
    %v196 = vpack.c.b16 %v181, %v180
    %v197 = vpack.c.b16 %v183, %v182
    %v198 = vpack.c.b16 %v185, %v184
    %v199 = vpack.c.b16 %v187, %v186
    %v200 = vpack.c.b16 %v189, %v188
    %v201 = vpack.c.b16 %v191, %v190
    %v202 = vpack.c.b16 %v193, %v192
    %v203 = vpack.c.b16 %v195, %v194
    %212 = vmatprep.subr.bf16.mxu0 0
    %213 = vmatpush1.bf16.msra.mxu0 %v196
    %214 = vmatprep.subr.bf16.mxu0 0
    %215 = vmatpush1.bf16.msra.mxu0 %v197
    %216 = vmatprep.subr.bf16.mxu0 0
    %217 = vmatpush1.bf16.msra.mxu0 %v198
    %218 = vmatprep.subr.bf16.mxu0 0
    %219 = vmatpush1.bf16.msra.mxu0 %v199
    %220 = vmatprep.subr.bf16.mxu0 0
    %221 = vmatpush1.bf16.msra.mxu0 %v200
    %222 = vmatprep.subr.bf16.mxu0 0
    %223 = vmatpush1.bf16.msra.mxu0 %v201
    %224 = vmatprep.subr.bf16.mxu0 0
    %225 = vmatpush1.bf16.msra.mxu0 %v202
    %226 = vmatprep.subr.bf16.mxu0 0
    %227 = vmatpush1.bf16.msra.mxu0 %v203
    %228 = vmatprep.subr.bf16.mxu0 0
    %229 = vmatpush1.bf16.msra.mxu0 0
    %230 = vmatprep.subr.bf16.mxu0 0
    %231 = vmatpush1.bf16.msra.mxu0 0
    %232 = vmatprep.subr.bf16.mxu0 0
    %233 = vmatpush1.bf16.msra.mxu0 0
    %234 = vmatprep.subr.bf16.mxu0 0
    %235 = vmatpush1.bf16.msra.mxu0 0
    %236 = vmatprep.subr.bf16.mxu0 0
    %237 = vmatpush1.bf16.msra.mxu0 0
    %238 = vmatprep.subr.bf16.mxu0 0
    %239 = vmatpush1.bf16.msra.mxu0 0
    %240 = vmatprep.subr.bf16.mxu0 0
    %241 = vmatpush1.bf16.msra.mxu0 0
    %242 = vmatprep.subr.bf16.mxu0 0
    %243 = vmatpush1.bf16.msra.mxu0 0
    %244 = vmatprep.mubr.bf16.mxu0 0
    %245 = vmatmul.mubr.bf16.gmra.mrb[0].mxu0 %v140
    %v246 = vpop.f32.mrb[0].mxu0
    %v247 = vadd.f32 %v162, %v246
    %v248 = vpop.f32.mrb[0].mxu0
    %v249 = vpop.f32.mrb[0].mxu0
    %v250 = vpop.f32.mrb[0].mxu0
    %251 = vdwg.mxu0
    %v252 = vmax.f32 %v247, 0.0
    %v253 = vpack.c.bf16 %v252, %v252
    %v254 = vld [vmem:[#allocation8] sm:$0xf]
    %v255 = vld [vmem:[#allocation8 + $0x4] sm:$0xf]
    %v256 = vld [vmem:[#allocation8 + $0x8] sm:$0xf]
    %v257 = vld [vmem:[#allocation8 + $0xc] sm:$0xf]
    %v258 = vld [vmem:[#allocation8 + $0x10] sm:$0xf]
    %v259 = vld [vmem:[#allocation8 + $0x14] sm:$0xf]
    %v260 = vld [vmem:[#allocation8 + $0x18] sm:$0xf]
    %v261 = vld [vmem:[#allocation8 + $0x1c] sm:$0xf]
    %v262 = vld [vmem:[#allocation8 + $0x20] sm:$0xf]
    %v263 = vld [vmem:[#allocation8 + $0x24] sm:$0xf]
    %v264 = vld [vmem:[#allocation8 + $0x28] sm:$0xf]
    %v265 = vld [vmem:[#allocation8 + $0x2c] sm:$0xf]
    %v266 = vld [vmem:[#allocation8 + $0x30] sm:$0xf]
    %v267 = vld [vmem:[#allocation8 + $0x34] sm:$0xf]
    %v268 = vld [vmem:[#allocation8 + $0x38] sm:$0xf]
    %v269 = vld [vmem:[#allocation8 + $0x3c] sm:$0xf]
    %v270 = vld [vmem:[%s6] sm:$0x1]
    %v272 = vlaneseq
    %v273 = vshrl.u32 %v272, 7
    %v274 = vsub.s32 0, %v273
    %v275 = vrot.slane %v270, %v274
    %v293 = vunpack.c.l.b16 %v254
    %v294 = vunpack.c.l.b16 %v255
    %v295 = vunpack.c.l.b16 %v256
    %v296 = vunpack.c.l.b16 %v257
    %v297 = vunpack.c.l.b16 %v258
    %v298 = vunpack.c.l.b16 %v259
    %v299 = vunpack.c.l.b16 %v260
    %v300 = vunpack.c.l.b16 %v261
    %v301 = vunpack.c.l.b16 %v262
    %v302 = vunpack.c.l.b16 %v263
    %v303 = vunpack.c.l.b16 %v264
    %v304 = vunpack.c.l.b16 %v265
    %v305 = vunpack.c.l.b16 %v266
    %v306 = vunpack.c.l.b16 %v267
    %v307 = vunpack.c.l.b16 %v268
    %v308 = vunpack.c.l.b16 %v269
    %v309 = vpack.c.b16 %v294, %v293
    %v310 = vpack.c.b16 %v296, %v295
    %v311 = vpack.c.b16 %v298, %v297
    %v312 = vpack.c.b16 %v300, %v299
    %v313 = vpack.c.b16 %v302, %v301
    %v314 = vpack.c.b16 %v304, %v303
    %v315 = vpack.c.b16 %v306, %v305
    %v316 = vpack.c.b16 %v308, %v307
    %325 = vmatprep.subr.bf16.mxu0 0
    %326 = vmatpush1.bf16.msra.mxu0 %v309
    %327 = vmatprep.subr.bf16.mxu0 0
    %328 = vmatpush1.bf16.msra.mxu0 %v310
    %329 = vmatprep.subr.bf16.mxu0 0
    %330 = vmatpush1.bf16.msra.mxu0 %v311
    %331 = vmatprep.subr.bf16.mxu0 0
    %332 = vmatpush1.bf16.msra.mxu0 %v312
    %333 = vmatprep.subr.bf16.mxu0 0
    %334 = vmatpush1.bf16.msra.mxu0 %v313
    %335 = vmatprep.subr.bf16.mxu0 0
    %336 = vmatpush1.bf16.msra.mxu0 %v314
    %337 = vmatprep.subr.bf16.mxu0 0
    %338 = vmatpush1.bf16.msra.mxu0 %v315
    %339 = vmatprep.subr.bf16.mxu0 0
    %340 = vmatpush1.bf16.msra.mxu0 %v316
    %341 = vmatprep.subr.bf16.mxu0 0
    %342 = vmatpush1.bf16.msra.mxu0 0
    %343 = vmatprep.subr.bf16.mxu0 0
    %344 = vmatpush1.bf16.msra.mxu0 0
    %345 = vmatprep.subr.bf16.mxu0 0
    %346 = vmatpush1.bf16.msra.mxu0 0
    %347 = vmatprep.subr.bf16.mxu0 0
    %348 = vmatpush1.bf16.msra.mxu0 0
    %349 = vmatprep.subr.bf16.mxu0 0
    %350 = vmatpush1.bf16.msra.mxu0 0
    %351 = vmatprep.subr.bf16.mxu0 0
    %352 = vmatpush1.bf16.msra.mxu0 0
    %353 = vmatprep.subr.bf16.mxu0 0
    %354 = vmatpush1.bf16.msra.mxu0 0
    %355 = vmatprep.subr.bf16.mxu0 0
    %356 = vmatpush1.bf16.msra.mxu0 0
    %357 = vmatprep.mubr.bf16.mxu0 0
    %358 = vmatmul.mubr.bf16.gmra.mrb[0].mxu0 %v253
    %v359 = vpop.f32.mrb[0].mxu0
    %v360 = vadd.f32 %v275, %v359
    %v361 = vpop.f32.mrb[0].mxu0
    %v362 = vpop.f32.mrb[0].mxu0
    %v363 = vpop.f32.mrb[0].mxu0
    %364 = vdwg.mxu0
    %vm365 = vcmask 31744
    %366 = vst.msk [vmem:[#allocation10] sm:$0xff] %vm365, %v360
    // Predicated region
    $region46: #{tpu_custom_call.1} parent=1 // pred_check
      _
    $region47: #{tpu_custom_call.1} parent=1 // pred_check_branch
      %368 = sbr.rel (0) target = $region49
    $region48: #{tpu_custom_call.1} parent=1 // pred_region
      %s370 = ssub.s32 128, 32
      %371 = vsyncadd [#allocation4], %s370
      %s372 = sshll.u32 [#allocation10], 4
      %s373 = int_to_ptr.vmem [resolvable:$true] %s372
      %378 = dma.vmem_to_hbm [thread:$0]  %s373, 32, %s7, [#allocation4], 32, 32, 2
    $region49: #{tpu_custom_call.1} parent=1 // pred_fallthru
      _
    // Predicated region
    $region50: #{tpu_custom_call.1} parent=1 // pred_check
      _
    $region51: #{tpu_custom_call.1} parent=1 // pred_check_branch
      %380 = sbr.rel (0) target = $region53
    $region52: #{tpu_custom_call.1} parent=1 // pred_region
      %381 = dma.done [#allocation4], 128
    $region53: #{tpu_custom_call.1} parent=1 // pred_fallthru
      _
    %382 = vsyncpa [#allocation3], 1
    %383 = vsyncpa [#allocation6], 1
    %384 = vsyncpa [#allocation9], 1
    %385 = vsyncpa [#allocation4], 1

</llo_original>
